<compile_context>
chip_gen: v6e
topology: v6e:2x2x1
jax: 0.10.0
libtpu: 0.0.40
codegen_flags: <defaults>
</compile_context>

<pallas_src>
import jax
import jax.numpy as jnp
from jax.experimental import pallas as pl
from jax.experimental.pallas import tpu as pltpu

_LANE = 128
_CORE_SPLITS = 2                      # per-core partial stats (v7x dual TC)


def _round_up(x, m):
    return (x + m - 1) // m * m


def _cdiv(a, b):
    return (a + b - 1) // b


def _vmem_limit_bytes():
    """Generation-aware scoped-VMEM limit (v5e/v6e: 128 MiB, v7x: 64 MiB)."""
    try:
        cap = int(pltpu.get_tpu_info().vmem_capacity_bytes)
    except Exception:                              # pragma: no cover
        cap = 64 * 1024 * 1024                     # conservative: v7x VMEM
    return min(3 * cap // 4, 96 * 1024 * 1024)


# ---------------------------------------------------------------------------
# Pallas kernels
# ---------------------------------------------------------------------------
def _stats_kernel(p_ref, w_ref, stats_ref):
    """Per-column sum / sum-of-squares of (patches_tile @ W).

    stats_ref is a per-core resident (8, Fc) accumulator: row 0 = sum,
    row 1 = sum of squares, rows 2..7 unused (sublane alignment only).
    """
    y = jnp.dot(p_ref[...], w_ref[...], preferred_element_type=jnp.float32)

    @pl.when(pl.program_id(1) == 0)       # first row-block of this core split
    def _():
        stats_ref[...] = jnp.zeros_like(stats_ref)

    # Single fused (2, Fc) read-modify-write per grid step.
    s = jnp.sum(y, axis=0, keepdims=True)
    sq = jnp.sum(y * y, axis=0, keepdims=True)
    stats_ref[0:2, :] += jnp.concatenate([s, sq], axis=0)


def _apply_kernel(p_ref, w_ref, aff_ref, o_ref):
    """Recompute the sub-pixel matmul, apply folded BatchNorm affine + ReLU.

    aff_ref row 0 = per-column scale, row 1 = per-column shift.
    """
    y = jnp.dot(p_ref[...], w_ref[...], preferred_element_type=jnp.float32)
    out = y * aff_ref[0:1, :] + aff_ref[1:2, :]
    o_ref[...] = jnp.maximum(out, 0.0).astype(o_ref.dtype)


# ---------------------------------------------------------------------------
# JAX glue: sub-pixel decomposition of the stride-2 transposed conv
# ---------------------------------------------------------------------------
def _subpixel_patches(x_nchw, dtype):
    """(N, C, H, W) -> (N*H*W, 4C) in `dtype`.  Row (n,u,v) holds the 2x2
    neighbourhood [x(u,v), x(u,v+1), x(u+1,v), x(u+1,v+1)] (zero-padded at
    bottom/right), channels-last within each tap.  Built directly in the
    compute dtype so the patch buffer is written once (no f32 intermediate)."""
    N, C, H, W = x_nchw.shape
    x = x_nchw.astype(dtype).transpose(0, 2, 3, 1)            # NHWC, dtype
    xp = jnp.pad(x, ((0, 0), (0, 1), (0, 1), (0, 0)))
    taps = [xp[:, dy:dy + H, dx:dx + W, :] for dy in (0, 1) for dx in (0, 1)]
    return jnp.concatenate(taps, axis=-1).reshape(N * H * W, 4 * C)


def _combined_weight(w_t):
    """ConvTranspose2d weight (C, F, 3, 3) -> (4C, 4F) sub-pixel matrix.

    Row block t = 2*dy+dx multiplies input tap x[u+dy, v+dx]; column block
    p = 2*py+px produces output parity phase (oy%2, ox%2) = (py, px):
    out[2u+py, 2v+px] uses kernel tap (ky, kx) = (py+1-2dy, px+1-2dx)
    when in range, zero otherwise.
    """
    C, F, kH, kW = w_t.shape
    assert kH == 3 and kW == 3, "Up uses a 3x3 transposed conv"
    w = jnp.zeros((4, C, 4, F), dtype=jnp.float32)
    for dy in range(2):
        for dx in range(2):
            for py in range(2):
                for px in range(2):
                    ky, kx = py + 1 - 2 * dy, px + 1 - 2 * dx
                    if 0 <= ky < 3 and 0 <= kx < 3:
                        w = w.at[2 * dy + dx, :, 2 * py + px, :].set(
                            w_t[:, :, ky, kx].astype(jnp.float32))
    return w.reshape(4 * C, 4 * F)


def _choose_tm(M, Kc, Fc, in_bytes, out_bytes, budget):
    """Largest row tile whose double-buffered streams fit the VMEM budget."""
    cap = max(8, _round_up(_cdiv(M, _CORE_SPLITS), 8))
    tm_fit = 8
    for t in (2048, 1024, 512, 256, 128, 64, 32, 16, 8):
        need = (2 * t * Kc * in_bytes        # patches stream, double buffered
                + 2 * t * Fc * out_bytes     # pass-2 output tile, dbl buffered
                + 2 * Kc * Fc * in_bytes     # weight block (held resident)
                + 8 * Fc * 4 + (128 << 10))  # affine/stats slabs + slack
        if need <= budget:
            tm_fit = t
            break
    return min(tm_fit, cap)


# ---------------------------------------------------------------------------
# Up.forward
# ---------------------------------------------------------------------------
def up_forward(x, w_t, conv_bias, gamma, beta, *, eps=1e-5,
               compute_dtype=jnp.bfloat16, out_dtype=jnp.float32,
               output_layout="NCHW"):
    """ConvTranspose2d(C->F, 3, stride=2, pad=1, out_pad=1) -> BatchNorm2d
    (training-mode batch statistics) -> ReLU.

    x: (N, C, H, W); w_t: (C, F, 3, 3); conv_bias/gamma/beta: (F,).

    compute_dtype: streaming dtype for patches/weights (default bfloat16 —
      recommended on v5e/v6e/v7x; the MXU accumulation, BN statistics and the
      affine fold remain float32).  Pass jnp.float32 for bit-tighter results.
    out_dtype: dtype of the kernel output stream (bf16 halves the largest
      HBM write if the consumer accepts it).
    output_layout:
      "PHASED": (N, H, W, 2, 2, F) — native kernel layout, ZERO post-kernel
                data movement (preferred for chained layers).
      "NHWC":   (N, 2H, 2W, F).
      "NCHW":   (N, F, 2H, 2W) — exact PyTorch layout parity (default); pays
                one full-tensor pixel-shuffle transpose.

    Note: the ConvTranspose bias cancels exactly under BatchNorm, so it is
    intentionally not added before the statistics accumulation (reduces
    E[y^2]-E[y]^2 cancellation).  conv_bias is accepted for API parity only.
    """
    del conv_bias
    if output_layout not in ("NCHW", "NHWC", "PHASED"):
        raise ValueError(f"unknown output_layout {output_layout!r}")
    N, C, H, W = x.shape
    C_w, F, _, _ = w_t.shape
    assert C_w == C
    OH, OW = 2 * H, 2 * W
    M = N * H * W                        # sub-pixel groups (4 outputs each)
    Kc = 4 * C                           # contraction dim (=256 for C=64)
    F4 = 4 * F                           # phase-combined output channels
    Fc = _round_up(F4, _LANE)            # lane-dense output width
    in_bytes = jnp.dtype(compute_dtype).itemsize
    out_bytes = jnp.dtype(out_dtype).itemsize

    vmem_limit = _vmem_limit_bytes()
    tm = _choose_tm(M, Kc, Fc, in_bytes, out_bytes, vmem_limit - (8 << 20))
    Mp = _round_up(M, _CORE_SPLITS * tm)         # padded rows (zeros)
    nb = Mp // (_CORE_SPLITS * tm)               # row blocks per core split

    # Patch buffer written once, directly in compute_dtype (bf16 by default).
    patches = _subpixel_patches(x, compute_dtype)
    patches = jnp.pad(patches, ((0, Mp - M), (0, 0)))
    w_comb = jnp.pad(_combined_weight(w_t), ((0, 0), (0, Fc - F4)))
    w_comb = w_comb.astype(compute_dtype)

    # Pass 1: per-channel sum / sum-of-squares (per-core resident slabs).
    stats = pl.pallas_call(
        _stats_kernel,
        out_shape=jax.ShapeDtypeStruct((_CORE_SPLITS * 8, Fc), jnp.float32),
        grid_spec=pltpu.PrefetchScalarGridSpec(
            num_scalar_prefetch=0,
            grid=(_CORE_SPLITS, nb),
            in_specs=[
                pl.BlockSpec((tm, Kc), lambda c, i, nb=nb: (c * nb + i, 0)),
                # constant block index -> weight stays resident, no re-DMA
                pl.BlockSpec((Kc, Fc), lambda c, i: (0, 0)),
            ],
            out_specs=pl.BlockSpec((8, Fc), lambda c, i: (c, 0)),
        ),
        compiler_params=pltpu.CompilerParams(
            dimension_semantics=("parallel", "arbitrary"),
            vmem_limit_bytes=vmem_limit),
    )(patches, w_comb)

    # Fold BN (training-mode, biased variance) into a per-column scale/shift.
    # Per-core partial slabs are reduced here (f32); for extremely large
    # N*H*W, extend _CORE_SPLITS / add a tree reduction if stats accuracy
    # becomes a concern.
    st = stats.reshape(_CORE_SPLITS, 8, Fc)
    col_sum = jnp.sum(st[:, 0, :], axis=0)[:F4]
    col_sq = jnp.sum(st[:, 1, :], axis=0)[:F4]
    count = float(N * OH * OW)                   # true elements per channel
    ch_sum = col_sum.reshape(4, F).sum(axis=0)
    ch_sq = col_sq.reshape(4, F).sum(axis=0)
    mean = ch_sum / count
    var = jnp.maximum(ch_sq / count - mean * mean, 0.0)
    inv = jax.lax.rsqrt(var + eps)
    scale_f = gamma.astype(jnp.float32) * inv
    shift_f = beta.astype(jnp.float32) - mean * scale_f
    # Fused affine operand: row 0 = scale, row 1 = shift (one input stream).
    affine = jnp.zeros((8, Fc), jnp.float32)
    affine = affine.at[0, :F4].set(jnp.tile(scale_f, 4))
    affine = affine.at[1, :F4].set(jnp.tile(shift_f, 4))

    # Pass 2: recompute matmul, apply folded BN affine + ReLU (lane-dense out).
    out_flat = pl.pallas_call(
        _apply_kernel,
        out_shape=jax.ShapeDtypeStruct((Mp, Fc), out_dtype),
        grid_spec=pltpu.PrefetchScalarGridSpec(
            num_scalar_prefetch=0,
            grid=(Mp // tm,),
            in_specs=[
                pl.BlockSpec((tm, Kc), lambda i: (i, 0)),
                pl.BlockSpec((Kc, Fc), lambda i: (0, 0)),
                pl.BlockSpec((8, Fc), lambda i: (0, 0)),
            ],
            out_specs=pl.BlockSpec((tm, Fc), lambda i: (i, 0)),
        ),
        compiler_params=pltpu.CompilerParams(
            dimension_semantics=("parallel",),
            vmem_limit_bytes=vmem_limit),
    )(patches, w_comb, affine)

    # Native phased layout: columns are already ordered (py, px, f), so this
    # reshape is free when Mp == M and Fc == 4F (the real-model case).
    phased = out_flat[:M, :F4].reshape(N, H, W, 2, 2, F)
    if output_layout == "PHASED":
        return phased                                    # zero post-kernel HBM
    if output_layout == "NHWC":
        return phased.transpose(0, 1, 3, 2, 4, 5).reshape(N, OH, OW, F)
    # NCHW (PyTorch parity) pays a full-tensor pixel shuffle (~40% of op HBM
    # bytes); prefer PHASED / NHWC consumers and/or out_dtype=bf16.
    return phased.transpose(0, 5, 1, 3, 2, 4).reshape(N, F, OH, OW)


# ---------------------------------------------------------------------------
# Pure-JAX reference (independent scatter-add formulation) for validation
# ---------------------------------------------------------------------------
def _reference(x, w_t, conv_bias, gamma, beta, eps=1e-5):
    N, C, H, W = x.shape
    _, F, k, _ = w_t.shape
    OH, OW = 2 * H, 2 * W
    acc = jnp.zeros((N, F, OH + 1, OW + 1), jnp.float32)
    for ky in range(k):
        for kx in range(k):
            contrib = jnp.einsum('nchw,cf->nfhw', x, w_t[:, :, ky, kx])
            acc = acc.at[:, :, ky:ky + 2 * H:2, kx:kx + 2 * W:2].add(contrib)
    conv = acc[:, :, 1:1 + OH, 1:1 + OW] + conv_bias[None, :, None, None]
    mean = conv.mean(axis=(0, 2, 3), keepdims=True)
    var = ((conv - mean) ** 2).mean(axis=(0, 2, 3), keepdims=True)   # biased
    y = (conv - mean) * jax.lax.rsqrt(var + eps)
    y = y * gamma[None, :, None, None] + beta[None, :, None, None]
    return jnp.maximum(y, 0.0)


# ---------------------------------------------------------------------------
if __name__ == "__main__":
    key = jax.random.PRNGKey(0)

    def _make(k, N, C, F, H, W):
        k_x, k_w, k_b, k_g, k_be = jax.random.split(k, 5)
        x = jax.random.normal(k_x, (N, C, H, W), jnp.float32)
        w_t = jax.random.normal(k_w, (C, F, 3, 3), jnp.float32) * 0.1
        b = jax.random.normal(k_b, (F,), jnp.float32) * 0.1
        g = 1.0 + 0.1 * jax.random.normal(k_g, (F,), jnp.float32)
        be = 0.1 * jax.random.normal(k_be, (F,), jnp.float32)
        return x, w_t, b, g, be

    k0, k1 = jax.random.split(key)

    # Main test shape (matches declared input_shapes): aligned, 4C=16, 4F=32.
    args0 = _make(k0, N=2, C=4, F=8, H=16, W=16)
    N, F, OH, OW = 2, 8, 32, 32
    ref = jax.block_until_ready(_reference(*args0))

    # 1) f32 compute, NCHW (PyTorch parity) — tight tolerance.
    out = jax.block_until_ready(up_forward(*args0, compute_dtype=jnp.float32))
    assert out.shape == (N, F, OH, OW), out.shape
    err = float(jnp.max(jnp.abs(out - ref)))
    assert jnp.allclose(out, ref, rtol=2e-3, atol=2e-3), err

    # 2) f32 compute, PHASED layout (zero post-kernel data movement).
    out_ph = jax.block_until_ready(
        up_forward(*args0, compute_dtype=jnp.float32, output_layout="PHASED"))
    assert out_ph.shape == (N, 16, 16, 2, 2, F), out_ph.shape
    ref_ph = ref.reshape(N, F, 16, 2, 16, 2).transpose(0, 2, 4, 3, 5, 1)
    err_ph = float(jnp.max(jnp.abs(out_ph - ref_ph)))
    assert jnp.allclose(out_ph, ref_ph, rtol=2e-3, atol=2e-3), err_ph

    # 3) Unaligned shape: exercises row padding (M=35) and lane padding (4F=24).
    args1 = _make(k1, N=1, C=3, F=6, H=5, W=7)
    out1 = jax.block_until_ready(up_forward(*args1, compute_dtype=jnp.float32))
    assert out1.shape == (1, 6, 10, 14), out1.shape
    ref1 = jax.block_until_ready(_reference(*args1))
    err1 = float(jnp.max(jnp.abs(out1 - ref1)))
    assert jnp.allclose(out1, ref1, rtol=2e-3, atol=2e-3), err1

    # 4) Default path: bf16 streaming (recommended on v5e/v6e/v7x), NCHW.
    out_bf = jax.block_until_ready(up_forward(*args0))
    err_bf = float(jnp.max(jnp.abs(out_bf - ref)))
    assert jnp.allclose(out_bf, ref, rtol=5e-2, atol=5e-2), err_bf

    # 5) bf16 compute + bf16 output stream + NHWC layout.
    out_nhwc = jax.block_until_ready(
        up_forward(*args0, out_dtype=jnp.bfloat16, output_layout="NHWC"))
    assert out_nhwc.shape == (N, OH, OW, F), out_nhwc.shape
    assert out_nhwc.dtype == jnp.bfloat16
    ref_nhwc = ref.transpose(0, 2, 3, 1)
    err_nhwc = float(jnp.max(jnp.abs(out_nhwc.astype(jnp.float32) - ref_nhwc)))
    assert jnp.allclose(out_nhwc.astype(jnp.float32), ref_nhwc,
                        rtol=1e-1, atol=1e-1), err_nhwc

    print("KERNEL_OK")
</pallas_src>

<mosaic_0001>
module attributes {stable_mosaic.version = 11 : i64} {
  func.func @_stats_kernel(%arg0: i32, %arg1: i32, %arg2: memref<256x16xf32, #tpu.memory_space<vmem>>, %arg3: memref<16x128xf32, #tpu.memory_space<vmem>>, %arg4: memref<8x128xf32, #tpu.memory_space<vmem>>) attributes {dimension_semantics = [#tpu.dimension_semantics<parallel>, #tpu.dimension_semantics<arbitrary>], iteration_bounds = array<i64: 2, 1>, scalar_prefetch = 0 : i64, scratch_operands = 0 : i64, tpu.core_type = #tpu.core_type<tc>, window_params = [{transform_indices = @transform_0, window_bounds = array<i64: 256, 16>}, {pipeline_mode = #tpu.pipeline_mode<synchronous>, transform_indices = @transform_1, window_bounds = array<i64: 16, 128>}, {transform_indices = @transform_2, window_bounds = array<i64: 8, 128>}]} {
    %c0 = arith.constant 0 : index
    %c0_0 = arith.constant 0 : index
    %0 = vector.load %arg2[%c0, %c0_0] : memref<256x16xf32, #tpu.memory_space<vmem>>, vector<256x16xf32>
    %c0_1 = arith.constant 0 : index
    %c0_2 = arith.constant 0 : index
    %1 = vector.load %arg3[%c0_1, %c0_2] : memref<16x128xf32, #tpu.memory_space<vmem>>, vector<16x128xf32>
    %cst = arith.constant dense<0.000000e+00> : vector<256x128xf32>
    %2 = tpu.matmul %0, %1, %cst {dimension_numbers = #tpu.dot_dimension_numbers<[1], [0], [0], [1], [0, 0, 1, 1], [], []>} : vector<256x16xf32>, vector<16x128xf32>, vector<256x128xf32> -> vector<256x128xf32>
    %c0_i32 = arith.constant 0 : i32
    %3 = arith.cmpi eq, %arg1, %c0_i32 : i32
    %4 = arith.extui %3 : i1 to i32
    %c0_i32_3 = arith.constant 0 : i32
    %5 = arith.cmpi ne, %4, %c0_i32_3 : i32
    scf.if %5 {
      %cst_10 = arith.constant 0.000000e+00 : f32
      %15 = vector.broadcast %cst_10 : f32 to vector<8x128xf32>
      %c0_11 = arith.constant 0 : index
      %c0_12 = arith.constant 0 : index
      %16 = vector.load %arg4[%c0_11, %c0_12] : memref<8x128xf32, #tpu.memory_space<vmem>>, vector<8x128xf32>
      tpu.vector_store %arg4[%c0_11, %c0_12], %15 {strides = array<i32>} : memref<8x128xf32, #tpu.memory_space<vmem>>, vector<8x128xf32>,
    } else {
    }
    %cst_4 = arith.constant dense<0.000000e+00> : vector<128xf32>
    %6 = vector.multi_reduction <add>, %2, %cst_4 [0] : vector<256x128xf32> to vector<128xf32>
    %7 = vector.shape_cast %6 : vector<128xf32> to vector<1x128xf32>
    %8 = arith.mulf %2, %2 : vector<256x128xf32>
    %cst_5 = arith.constant dense<0.000000e+00> : vector<128xf32>
    %9 = vector.multi_reduction <add>, %8, %cst_5 [0] : vector<256x128xf32> to vector<128xf32>
    %10 = vector.shape_cast %9 : vector<128xf32> to vector<1x128xf32>
    %c0_6 = arith.constant 0 : index
    %c0_7 = arith.constant 0 : index
    %11 = vector.load %arg4[%c0_6, %c0_7] : memref<8x128xf32, #tpu.memory_space<vmem>>, vector<2x128xf32>
    %12 = tpu.concatenate %7, %10 in 0 : vector<1x128xf32>, vector<1x128xf32> -> vector<2x128xf32>
    %13 = arith.addf %11, %12 : vector<2x128xf32>
    %c0_8 = arith.constant 0 : index
    %c0_9 = arith.constant 0 : index
    %14 = vector.load %arg4[%c0_8, %c0_9] : memref<8x128xf32, #tpu.memory_space<vmem>>, vector<2x128xf32>
    tpu.vector_store %arg4[%c0_8, %c0_9], %13 {strides = array<i32>} : memref<8x128xf32, #tpu.memory_space<vmem>>, vector<2x128xf32>,
    return
  }
  func.func @transform_0(%arg0: i32, %arg1: i32) -> (i32, i32) {
    %c1_i32 = arith.constant 1 : i32
    %0 = arith.muli %arg0, %c1_i32 : i32
    %1 = arith.addi %0, %arg1 : i32
    %c0_i32 = arith.constant 0 : i32
    %c0_i32_0 = arith.constant 0 : i32
    return %1, %c0_i32 : i32, i32
  }
  func.func @transform_1(%arg0: i32, %arg1: i32) -> (i32, i32) {
    %c0_i32 = arith.constant 0 : i32
    %c0_i32_0 = arith.constant 0 : i32
    %c0_i32_1 = arith.constant 0 : i32
    return %c0_i32, %c0_i32_0 : i32, i32
  }
  func.func @transform_2(%arg0: i32, %arg1: i32) -> (i32, i32) {
    %c0_i32 = arith.constant 0 : i32
    %c0_i32_0 = arith.constant 0 : i32
    return %arg0, %c0_i32 : i32, i32
  }
}

</mosaic_0001>

<llo_original>
// kernel: tpu_custom_call.1
$region0: #{tpu_custom_call.1}
  #allocation0 [shape = 'u32[]', space=smem, size = 0x4, offset = 0x4, fixed_abs, tag = 'smem constant byte address 0x4 - core index']
  #allocation1 [shape = 'u32[144,128]{1,0:T(1,128)}', space=vmem, size = 0x12000, scoped, tag = 'internal scratch']
  %s0 = inlined_call_operand.vmem [shape: f32[512,16], index: 0, kind: input, shape index: {}]
  %s1 = inlined_call_operand.vmem [shape: f32[16,128], index: 1, kind: input, shape index: {}]
  %s2 = inlined_call_operand.hbm [shape: f32[16,128], index: 2, kind: output, shape index: {}]
  %s3 = sld [smem:[#allocation0]]
  $region45: #{tpu_custom_call.1} parent=0
    _
  %s5 = ssub.s32 1, %s3
  %s6 = scalar_select 0, %s5, %s3
  $region1: #{tpu_custom_call.1} parent=0
    #allocation2 [shape = 'u8[8192]{0}', space=vmem, size = 0x2000, scoped, tag = 'output window, operand 0']
    #allocation3 [shape = 's32[2]{0}', space=sflag, size = 0x8, scoped, tag = 'scoped memory for tpu_custom_call.1']
    %7 = vsyncpa [#allocation3], 0
    %s8 = scalar_lea.sflag [#allocation3], 1
    %9 = vsyncpa %s8, 0
    loop: start=0, step=1, limit=4
    $region2: #{tpu_custom_call.1} parent=1 // loop_pre_header
      _
    $region3: #{tpu_custom_call.1} parent=1 // loop_header
      %s11 = sphi 0, %s15
      %p12 = scmp.ge.s32.totalorder %s11, 4
      %s18 = sphi 0, %s30
      %s19 = sphi 0, %s26
      %s20 = sphi 0, %s18
      %s21 = sphi 0, %s19
      %s22 = sphi 0, %s20
      %s23 = sphi 0, %s21
      %s35 = sphi 0, %s37
      %s38 = sphi 0, %s35
      %s39 = sphi 0, %s38
      %s55 = sphi 0, %s39
      %s59 = sphi 0, %s59
      %s61 = sphi 0, %s59
      %s62 = sphi 0, %s61
      %s76 = sphi 0, %s62
      %s82 = sphi 0, %s84
      %s85 = sphi 0, %s82
      %s86 = sphi 0, %s85
      %s102 = sphi 0, %s86
    $region4: #{tpu_custom_call.1} parent=1 // loop_header_branch
      %14 = sbr.rel (%p12) target = $region8
    $region5: #{tpu_custom_call.1} parent=1 // loop_body
      %s16 = ssub.s32 %s11, 1
      %s17 = ssub.s32 %s11, 2
      %s24 = sadd.s32 1, %s19
      %p25 = scmp.ge.s32.totalorder %s24, 1
      %s26 = scalar_select %p25, 0, %s24
      %s27 = sadd.s32 1, %s18
      %s28 = scalar_select %p25, %s27, %s18
      %p29 = scmp.ge.s32.totalorder %s28, 2
      %s30 = scalar_select %p29, 0, %s28
      %s31 = sadd.s32 %s18, %s19
      %s32 = sadd.s32 %s30, %s26
      %s33 = ssub.s32 %s31, %s32
      %p34 = scmp.eq.s32.totalorder %s33, 0
      %s36 = sadd.s32 %s35, 1
      %s37 = scalar_select %p34, %s35, %s36
      %p40 = pneg %p34
      %p41 = scmp.eq.s32.totalorder %s11, 1
      %p42 = por %p40, %p41
      %p43 = scmp.ne.s32.totalorder %s35, %s38
      %p44 = scmp.eq.s32.totalorder %s11, 0
      %p45 = por %p43, %p44
      %p46 = scmp.ne.s32.totalorder %s35, %s38
      %p47 = scmp.eq.s32.totalorder %s16, 1
      %p48 = por %p46, %p47
      %p49 = scmp.ne.s32.totalorder %s38, %s39
      %p50 = scmp.eq.s32.totalorder %s16, 0
      %p51 = por %p49, %p50
      %p52 = scmp.ne.s32.totalorder %s38, %s39
      %p53 = scmp.eq.s32.totalorder %s17, 1
      %p54 = por %p52, %p53
      %p56 = scmp.ne.s32.totalorder %s39, %s55
      %p57 = scmp.eq.s32.totalorder %s17, 0
      %p58 = por %p56, %p57
      %s60 = sadd.s32 %s59, 1
      %p63 = scmp.eq.s32.totalorder %s11, 1
      %p64 = scmp.ne.s32.totalorder %s59, %s61
      %p65 = scmp.eq.s32.totalorder %s11, 0
      %p66 = por %p64, %p65
      %p67 = scmp.ne.s32.totalorder %s59, %s61
      %p68 = scmp.eq.s32.totalorder %s16, 1
      %p69 = por %p67, %p68
      %p70 = scmp.ne.s32.totalorder %s61, %s62
      %p71 = scmp.eq.s32.totalorder %s16, 0
      %p72 = por %p70, %p71
      %p73 = scmp.ne.s32.totalorder %s61, %s62
      %p74 = scmp.eq.s32.totalorder %s17, 1
      %p75 = por %p73, %p74
      %p77 = scmp.ne.s32.totalorder %s62, %s76
      %p78 = scmp.eq.s32.totalorder %s17, 0
      %p79 = por %p77, %p78
      %s80 = ssub.s32 %s18, %s30
      %p81 = scmp.eq.s32.totalorder %s80, 0
      %s83 = sadd.s32 %s82, 1
      %s84 = scalar_select %p81, %s82, %s83
      %p87 = pneg %p81
      %p88 = scmp.eq.s32.totalorder %s11, 1
      %p89 = por %p87, %p88
      %p90 = scmp.ne.s32.totalorder %s82, %s85
      %p91 = scmp.eq.s32.totalorder %s11, 0
      %p92 = por %p90, %p91
      %p93 = scmp.ne.s32.totalorder %s82, %s85
      %p94 = scmp.eq.s32.totalorder %s16, 1
      %p95 = por %p93, %p94
      %p96 = scmp.ne.s32.totalorder %s85, %s86
      %p97 = scmp.eq.s32.totalorder %s16, 0
      %p98 = por %p96, %p97
      %p99 = scmp.ne.s32.totalorder %s85, %s86
      %p100 = scmp.eq.s32.totalorder %s17, 1
      %p101 = por %p99, %p100
      %p103 = scmp.ne.s32.totalorder %s86, %s102
      %p104 = scmp.eq.s32.totalorder %s17, 0
      %p105 = por %p103, %p104
      %p106 = scmp.le.s32.totalorder 1, %s11
      %p107 = scmp.lt.s32.totalorder %s11, 3
      %p108 = pnand %p106, %p107
      %p109 = pneg %p108
      // Predicated region
      $region9: #{tpu_custom_call.1} parent=5 // pred_check
        _
      $region10: #{tpu_custom_call.1} parent=5 // pred_check_branch
        %111 = sbr.rel (%p108) target = $region12
      $region11: #{tpu_custom_call.1} parent=5 // pred_region
        %s112 = ssub.s32 %s11, 1
        // Predicated region
        $region13: #{tpu_custom_call.1} parent=11 // pred_check
          %p113 = pneg %p72
        $region14: #{tpu_custom_call.1} parent=11 // pred_check_branch
          %115 = sbr.rel (%p113) target = $region16
        $region15: #{tpu_custom_call.1} parent=11 // pred_region
          _
        $region16: #{tpu_custom_call.1} parent=11 // pred_fallthru
          _
      $region12: #{tpu_custom_call.1} parent=5 // pred_fallthru
        _
      %p116 = scmp.lt.s32.totalorder %s11, 2
      // Predicated region
      $region17: #{tpu_custom_call.1} parent=5 // pred_check
        %p117 = pneg %p116
      $region18: #{tpu_custom_call.1} parent=5 // pred_check_branch
        %119 = sbr.rel (%p117) target = $region20
      $region19: #{tpu_custom_call.1} parent=5 // pred_region
        // Predicated region
        $region21: #{tpu_custom_call.1} parent=19 // pred_check
          %p120 = pneg %p45
        $region22: #{tpu_custom_call.1} parent=19 // pred_check_branch
          %122 = sbr.rel (%p120) target = $region24
        $region23: #{tpu_custom_call.1} parent=19 // pred_region
          %s123 = sadd.s32 %s18, %s19
          %s124 = smul.u32 32, %s123
          %p125 = scmp.lt.s32.totalorder %s124, 63
          %s126 = scalar_select %p125, %s124, 63
          %s127 = smul.addr %s126, 8
          %s128 = scalar_lea.vmem %s0, %s127
          %s129 = sadd.s32 %s18, %s19
          %s130 = smul.u32 32, %s129
        $region24: #{tpu_custom_call.1} parent=19 // pred_fallthru
          _
      $region20: #{tpu_custom_call.1} parent=5 // pred_fallthru
        _
      %p131 = scmp.le.s32.totalorder 1, %s11
      %p132 = scmp.lt.s32.totalorder %s11, 3
      %p133 = pnand %p131, %p132
      %p134 = pneg %p133
      // Predicated region
      $region25: #{tpu_custom_call.1} parent=5 // pred_check
        _
      $region26: #{tpu_custom_call.1} parent=5 // pred_check_branch
        %136 = sbr.rel (%p133) target = $region28
      $region27: #{tpu_custom_call.1} parent=5 // pred_region
        %s137 = ssub.s32 %s11, 1
        %s138 = sadd.s32 %s20, %s21
        %s139 = smul.u32 32, %s138
        %p140 = scmp.lt.s32.totalorder %s139, 63
        %s141 = scalar_select %p140, %s139, 63
        %s142 = smul.addr %s141, 8
        %s143 = scalar_lea.vmem %s0, %s142
        %p144 = pneg %p51
        %p145 = pneg %p48
        %p146 = pneg %p72
        %p147 = pneg %p69
        %p148 = pneg %p98
        %p149 = pneg %p95
        %s150 = sand.u32 %s85, 1
        %s151 = scalar_lea.sflag [#allocation3], %s150
        %s152 = sand.u32 %s85, 1
        %s153 = smul.addr %s152, 8
        %s154 = scalar_lea.vmem [#allocation2], %s153
        %s155 = sadd.s32 %s20, %s21
        %s156 = smul.u32 32, %s155
        %p157 = scmp.lt.s32.totalorder %s156, 63
        %s158 = scalar_select %p157, %s156, 63
        %s159 = smul.addr %s158, 8
        %s160 = scalar_lea.vmem %s0, %s159
        %s161 = sadd.s32 %s20, %s21
        %s162 = smul.u32 32, %s161
        %v163 = vld [vmem:[%s160] sm:$0xff]
        %v164 = vld [vmem:[%s160 + $0x8] sm:$0xff]
        %v165 = vld [vmem:[%s160 + $0x10] sm:$0xff]
        %v166 = vld [vmem:[%s160 + $0x18] sm:$0xff]
        %v167 = vld [vmem:[%s160 + $0x20] sm:$0xff]
        %v168 = vld [vmem:[%s160 + $0x28] sm:$0xff]
        %v169 = vld [vmem:[%s160 + $0x30] sm:$0xff]
        %v170 = vld [vmem:[%s160 + $0x38] sm:$0xff]
        %v171 = vld [vmem:[%s160 + $0x40] sm:$0xff]
        %v172 = vld [vmem:[%s160 + $0x48] sm:$0xff]
        %v173 = vld [vmem:[%s160 + $0x50] sm:$0xff]
        %v174 = vld [vmem:[%s160 + $0x58] sm:$0xff]
        %v175 = vld [vmem:[%s160 + $0x60] sm:$0xff]
        %v176 = vld [vmem:[%s160 + $0x68] sm:$0xff]
        %v177 = vld [vmem:[%s160 + $0x70] sm:$0xff]
        %v178 = vld [vmem:[%s160 + $0x78] sm:$0xff]
        %v179 = vld [vmem:[%s160 + $0x80] sm:$0xff]
        %v180 = vld [vmem:[%s160 + $0x88] sm:$0xff]
        %v181 = vld [vmem:[%s160 + $0x90] sm:$0xff]
        %v182 = vld [vmem:[%s160 + $0x98] sm:$0xff]
        %v183 = vld [vmem:[%s160 + $0xa0] sm:$0xff]
        %v184 = vld [vmem:[%s160 + $0xa8] sm:$0xff]
        %v185 = vld [vmem:[%s160 + $0xb0] sm:$0xff]
        %v186 = vld [vmem:[%s160 + $0xb8] sm:$0xff]
        %v187 = vld [vmem:[%s160 + $0xc0] sm:$0xff]
        %v188 = vld [vmem:[%s160 + $0xc8] sm:$0xff]
        %v189 = vld [vmem:[%s160 + $0xd0] sm:$0xff]
        %v190 = vld [vmem:[%s160 + $0xd8] sm:$0xff]
        %v191 = vld [vmem:[%s160 + $0xe0] sm:$0xff]
        %v192 = vld [vmem:[%s160 + $0xe8] sm:$0xff]
        %v193 = vld [vmem:[%s160 + $0xf0] sm:$0xff]
        %v194 = vld [vmem:[%s160 + $0xf8] sm:$0xff]
        %v195 = vld [vmem:[%s1] sm:$0xff]
        %v196 = vld [vmem:[%s1 + $0x8] sm:$0xff]
        %vm197 = vcmask 130048
        %v199 = vsel %vm197, %v163, 0
        %v202 = vsel %vm197, %v164, 0
        %v205 = vsel %vm197, %v165, 0
        %v208 = vsel %vm197, %v166, 0
        %v211 = vsel %vm197, %v167, 0
        %v214 = vsel %vm197, %v168, 0
        %v217 = vsel %vm197, %v169, 0
        %v220 = vsel %vm197, %v170, 0
        %v223 = vsel %vm197, %v171, 0
        %v226 = vsel %vm197, %v172, 0
        %v229 = vsel %vm197, %v173, 0
        %v232 = vsel %vm197, %v174, 0
        %v235 = vsel %vm197, %v175, 0
        %v238 = vsel %vm197, %v176, 0
        %v241 = vsel %vm197, %v177, 0
        %v244 = vsel %vm197, %v178, 0
        %v247 = vsel %vm197, %v179, 0
        %v250 = vsel %vm197, %v180, 0
        %v253 = vsel %vm197, %v181, 0
        %v256 = vsel %vm197, %v182, 0
        %v259 = vsel %vm197, %v183, 0
        %v262 = vsel %vm197, %v184, 0
        %v265 = vsel %vm197, %v185, 0
        %v268 = vsel %vm197, %v186, 0
        %v271 = vsel %vm197, %v187, 0
        %v274 = vsel %vm197, %v188, 0
        %v277 = vsel %vm197, %v189, 0
        %v280 = vsel %vm197, %v190, 0
        %v283 = vsel %vm197, %v191, 0
        %v286 = vsel %vm197, %v192, 0
        %v289 = vsel %vm197, %v193, 0
        %v292 = vsel %vm197, %v194, 0
        %294 = vmatprep.subr.mxu0 0.0
        %295 = vmatpush1.msra.mxu0 0.0
        %296 = vmatprep.subr.mxu0 0.0
        %297 = vmatpush1.msra.mxu0 0.0
        %298 = vmatprep.subr.mxu0 0.0
        %299 = vmatpush1.msra.mxu0 0.0
        %300 = vmatprep.subr.mxu0 0.0
        %301 = vmatpush1.msra.mxu0 0.0
        %302 = vmatprep.subr.mxu0 0.0
        %303 = vmatpush1.msra.mxu0 0.0
        %304 = vmatprep.subr.mxu0 0.0
        %305 = vmatpush1.msra.mxu0 0.0
        %306 = vmatprep.subr.mxu0 0.0
        %307 = vmatpush1.msra.mxu0 0.0
        %308 = vmatprep.subr.mxu0 0.0
        %309 = vmatpush1.msra.mxu0 0.0
        %310 = vmatprep.subr.mxu0 0.0
        %311 = vmatpush1.msra.mxu0 0.0
        %312 = vmatprep.subr.mxu0 0.0
        %313 = vmatpush1.msra.mxu0 0.0
        %314 = vmatprep.subr.mxu0 0.0
        %315 = vmatpush1.msra.mxu0 0.0
        %316 = vmatprep.subr.mxu0 0.0
        %317 = vmatpush1.msra.mxu0 0.0
        %318 = vmatprep.subr.mxu0 0.0
        %319 = vmatpush1.msra.mxu0 0.0
        %320 = vmatprep.subr.mxu0 0.0
        %321 = vmatpush1.msra.mxu0 0.0
        %322 = vmatprep.subr.mxu0 0.0
        %323 = vmatpush1.msra.mxu0 %v196
        %324 = vmatprep.subr.mxu0 0.0
        %325 = vmatpush1.msra.mxu0 %v195
        %326 = vmatprep.subr.mxu0 0.0
        %327 = vmatpush2.msra.mxu0 0.0
        %328 = vmatprep.subr.mxu0 0.0
        %329 = vmatpush2.msra.mxu0 0.0
        %330 = vmatprep.subr.mxu0 0.0
        %331 = vmatpush2.msra.mxu0 0.0
        %332 = vmatprep.subr.mxu0 0.0
        %333 = vmatpush2.msra.mxu0 0.0
        %334 = vmatprep.subr.mxu0 0.0
        %335 = vmatpush2.msra.mxu0 0.0
        %336 = vmatprep.subr.mxu0 0.0
        %337 = vmatpush2.msra.mxu0 0.0
        %338 = vmatprep.subr.mxu0 0.0
        %339 = vmatpush2.msra.mxu0 0.0
        %340 = vmatprep.subr.mxu0 0.0
        %341 = vmatpush2.msra.mxu0 0.0
        %342 = vmatprep.subr.mxu0 0.0
        %343 = vmatpush2.msra.mxu0 0.0
        %344 = vmatprep.subr.mxu0 0.0
        %345 = vmatpush2.msra.mxu0 0.0
        %346 = vmatprep.subr.mxu0 0.0
        %347 = vmatpush2.msra.mxu0 0.0
        %348 = vmatprep.subr.mxu0 0.0
        %349 = vmatpush2.msra.mxu0 0.0
        %350 = vmatprep.subr.mxu0 0.0
        %351 = vmatpush2.msra.mxu0 0.0
        %352 = vmatprep.subr.mxu0 0.0
        %353 = vmatpush2.msra.mxu0 0.0
        %354 = vmatprep.subr.mxu0 0.0
        %355 = vmatpush2.msra.mxu0 0.0
        %356 = vmatprep.subr.mxu0 0.0
        %357 = vmatpush2.msra.mxu0 0.0
        %358 = vmatprep.mubr.f32.mxu0 0.0
        %359 = vmatmul.mubr.f32.gmra.mxu0 %v199
        %v360 = vpop.f32.mrf.mxu0
        %v361 = vadd.f32 0.0, %v360
        %v362 = vpop.f32.mrf.mxu0
        %363 = vmatprep.mubr.f32.mxu0 0.0
        %364 = vmatmul.mubr.f32.gmra.mxu0 %v202
        %v365 = vpop.f32.mrf.mxu0
        %v366 = vadd.f32 0.0, %v365
        %v367 = vpop.f32.mrf.mxu0
        %368 = vmatprep.mubr.f32.mxu0 0.0
        %369 = vmatmul.mubr.f32.gmra.mxu0 %v205
        %v370 = vpop.f32.mrf.mxu0
        %v371 = vadd.f32 0.0, %v370
        %v372 = vpop.f32.mrf.mxu0
        %373 = vmatprep.mubr.f32.mxu0 0.0
        %374 = vmatmul.mubr.f32.gmra.mxu0 %v208
        %v375 = vpop.f32.mrf.mxu0
        %v376 = vadd.f32 0.0, %v375
        %v377 = vpop.f32.mrf.mxu0
        %378 = vmatprep.mubr.f32.mxu0 0.0
        %379 = vmatmul.mubr.f32.gmra.mxu0 %v211
        %v380 = vpop.f32.mrf.mxu0
        %v381 = vadd.f32 0.0, %v380
        %v382 = vpop.f32.mrf.mxu0
        %383 = vmatprep.mubr.f32.mxu0 0.0
        %384 = vmatmul.mubr.f32.gmra.mxu0 %v214
        %v385 = vpop.f32.mrf.mxu0
        %v386 = vadd.f32 0.0, %v385
        %v387 = vpop.f32.mrf.mxu0
        %388 = vmatprep.mubr.f32.mxu0 0.0
        %389 = vmatmul.mubr.f32.gmra.mxu0 %v217
        %v390 = vpop.f32.mrf.mxu0
        %v391 = vadd.f32 0.0, %v390
        %v392 = vpop.f32.mrf.mxu0
        %393 = vmatprep.mubr.f32.mxu0 0.0
        %394 = vmatmul.mubr.f32.gmra.mxu0 %v220
        %v395 = vpop.f32.mrf.mxu0
        %v396 = vadd.f32 0.0, %v395
        %v397 = vpop.f32.mrf.mxu0
        %398 = vmatprep.mubr.f32.mxu0 0.0
        %399 = vmatmul.mubr.f32.gmra.mxu0 %v223
        %v400 = vpop.f32.mrf.mxu0
        %v401 = vadd.f32 0.0, %v400
        %v402 = vpop.f32.mrf.mxu0
        %403 = vmatprep.mubr.f32.mxu0 0.0
        %404 = vmatmul.mubr.f32.gmra.mxu0 %v226
        %v405 = vpop.f32.mrf.mxu0
        %v406 = vadd.f32 0.0, %v405
        %v407 = vpop.f32.mrf.mxu0
        %408 = vmatprep.mubr.f32.mxu0 0.0
        %409 = vmatmul.mubr.f32.gmra.mxu0 %v229
        %v410 = vpop.f32.mrf.mxu0
        %v411 = vadd.f32 0.0, %v410
        %v412 = vpop.f32.mrf.mxu0
        %413 = vmatprep.mubr.f32.mxu0 0.0
        %414 = vmatmul.mubr.f32.gmra.mxu0 %v232
        %v415 = vpop.f32.mrf.mxu0
        %v416 = vadd.f32 0.0, %v415
        %v417 = vpop.f32.mrf.mxu0
        %418 = vmatprep.mubr.f32.mxu0 0.0
        %419 = vmatmul.mubr.f32.gmra.mxu0 %v235
        %v420 = vpop.f32.mrf.mxu0
        %v421 = vadd.f32 0.0, %v420
        %v422 = vpop.f32.mrf.mxu0
        %423 = vmatprep.mubr.f32.mxu0 0.0
        %424 = vmatmul.mubr.f32.gmra.mxu0 %v238
        %v425 = vpop.f32.mrf.mxu0
        %v426 = vadd.f32 0.0, %v425
        %v427 = vpop.f32.mrf.mxu0
        %428 = vmatprep.mubr.f32.mxu0 0.0
        %429 = vmatmul.mubr.f32.gmra.mxu0 %v241
        %v430 = vpop.f32.mrf.mxu0
        %v431 = vadd.f32 0.0, %v430
        %v432 = vpop.f32.mrf.mxu0
        %433 = vmatprep.mubr.f32.mxu0 0.0
        %434 = vmatmul.mubr.f32.gmra.mxu0 %v244
        %v435 = vpop.f32.mrf.mxu0
        %v436 = vadd.f32 0.0, %v435
        %v437 = vpop.f32.mrf.mxu0
        %438 = vmatprep.mubr.f32.mxu0 0.0
        %439 = vmatmul.mubr.f32.gmra.mxu0 %v247
        %v440 = vpop.f32.mrf.mxu0
        %v441 = vadd.f32 0.0, %v440
        %v442 = vpop.f32.mrf.mxu0
        %443 = vmatprep.mubr.f32.mxu0 0.0
        %444 = vmatmul.mubr.f32.gmra.mxu0 %v250
        %v445 = vpop.f32.mrf.mxu0
        %v446 = vadd.f32 0.0, %v445
        %v447 = vpop.f32.mrf.mxu0
        %448 = vmatprep.mubr.f32.mxu0 0.0
        %449 = vmatmul.mubr.f32.gmra.mxu0 %v253
        %v450 = vpop.f32.mrf.mxu0
        %v451 = vadd.f32 0.0, %v450
        %v452 = vpop.f32.mrf.mxu0
        %453 = vmatprep.mubr.f32.mxu0 0.0
        %454 = vmatmul.mubr.f32.gmra.mxu0 %v256
        %v455 = vpop.f32.mrf.mxu0
        %v456 = vadd.f32 0.0, %v455
        %v457 = vpop.f32.mrf.mxu0
        %458 = vmatprep.mubr.f32.mxu0 0.0
        %459 = vmatmul.mubr.f32.gmra.mxu0 %v259
        %v460 = vpop.f32.mrf.mxu0
        %v461 = vadd.f32 0.0, %v460
        %v462 = vpop.f32.mrf.mxu0
        %463 = vmatprep.mubr.f32.mxu0 0.0
        %464 = vmatmul.mubr.f32.gmra.mxu0 %v262
        %v465 = vpop.f32.mrf.mxu0
        %v466 = vadd.f32 0.0, %v465
        %v467 = vpop.f32.mrf.mxu0
        %468 = vmatprep.mubr.f32.mxu0 0.0
        %469 = vmatmul.mubr.f32.gmra.mxu0 %v265
        %v470 = vpop.f32.mrf.mxu0
        %v471 = vadd.f32 0.0, %v470
        %v472 = vpop.f32.mrf.mxu0
        %473 = vmatprep.mubr.f32.mxu0 0.0
        %474 = vmatmul.mubr.f32.gmra.mxu0 %v268
        %v475 = vpop.f32.mrf.mxu0
        %v476 = vadd.f32 0.0, %v475
        %v477 = vpop.f32.mrf.mxu0
        %478 = vmatprep.mubr.f32.mxu0 0.0
        %479 = vmatmul.mubr.f32.gmra.mxu0 %v271
        %v480 = vpop.f32.mrf.mxu0
        %v481 = vadd.f32 0.0, %v480
        %v482 = vpop.f32.mrf.mxu0
        %483 = vmatprep.mubr.f32.mxu0 0.0
        %484 = vmatmul.mubr.f32.gmra.mxu0 %v274
        %v485 = vpop.f32.mrf.mxu0
        %v486 = vadd.f32 0.0, %v485
        %v487 = vpop.f32.mrf.mxu0
        %488 = vmatprep.mubr.f32.mxu0 0.0
        %489 = vmatmul.mubr.f32.gmra.mxu0 %v277
        %v490 = vpop.f32.mrf.mxu0
        %v491 = vadd.f32 0.0, %v490
        %v492 = vpop.f32.mrf.mxu0
        %493 = vmatprep.mubr.f32.mxu0 0.0
        %494 = vmatmul.mubr.f32.gmra.mxu0 %v280
        %v495 = vpop.f32.mrf.mxu0
        %v496 = vadd.f32 0.0, %v495
        %v497 = vpop.f32.mrf.mxu0
        %498 = vmatprep.mubr.f32.mxu0 0.0
        %499 = vmatmul.mubr.f32.gmra.mxu0 %v283
        %v500 = vpop.f32.mrf.mxu0
        %v501 = vadd.f32 0.0, %v500
        %v502 = vpop.f32.mrf.mxu0
        %503 = vmatprep.mubr.f32.mxu0 0.0
        %504 = vmatmul.mubr.f32.gmra.mxu0 %v286
        %v505 = vpop.f32.mrf.mxu0
        %v506 = vadd.f32 0.0, %v505
        %v507 = vpop.f32.mrf.mxu0
        %508 = vmatprep.mubr.f32.mxu0 0.0
        %509 = vmatmul.mubr.f32.gmra.mxu0 %v289
        %v510 = vpop.f32.mrf.mxu0
        %v511 = vadd.f32 0.0, %v510
        %v512 = vpop.f32.mrf.mxu0
        %513 = vmatprep.mubr.f32.mxu0 0.0
        %514 = vmatmul.mubr.f32.gmra.mxu0 %v292
        %v515 = vpop.f32.mrf.mxu0
        %v516 = vadd.f32 0.0, %v515
        %v517 = vpop.f32.mrf.mxu0
        %518 = vdwg.mxu0
        %p519 = scmp.eq.s32.totalorder %s21, 0
        // Predicated region
        $region29: #{tpu_custom_call.1} parent=27 // pred_check
          %p520 = pneg %p519
        $region30: #{tpu_custom_call.1} parent=27 // pred_check_branch
          %522 = sbr.rel (%p520) target = $region32
        $region31: #{tpu_custom_call.1} parent=27 // pred_region
          %523 = vst [vmem:[%s154] sm:$0xff] 0.0
        $region32: #{tpu_custom_call.1} parent=27 // pred_fallthru
          _
        %v524 = vadd.f32 %v361, %v366
        %v525 = vadd.f32 %v524, %v371
        %v526 = vadd.f32 %v525, %v376
        %v527 = vadd.f32 %v526, %v381
        %v528 = vadd.f32 %v527, %v386
        %v529 = vadd.f32 %v528, %v391
        %v530 = vadd.f32 %v529, %v396
        %v531 = vadd.f32 %v530, %v401
        %v532 = vadd.f32 %v531, %v406
        %v533 = vadd.f32 %v532, %v411
        %v534 = vadd.f32 %v533, %v416
        %v535 = vadd.f32 %v534, %v421
        %v536 = vadd.f32 %v535, %v426
        %v537 = vadd.f32 %v536, %v431
        %v538 = vadd.f32 %v537, %v436
        %v539 = vadd.f32 %v538, %v441
        %v540 = vadd.f32 %v539, %v446
        %v541 = vadd.f32 %v540, %v451
        %v542 = vadd.f32 %v541, %v456
        %v543 = vadd.f32 %v542, %v461
        %v544 = vadd.f32 %v543, %v466
        %v545 = vadd.f32 %v544, %v471
        %v546 = vadd.f32 %v545, %v476
        %v547 = vadd.f32 %v546, %v481
        %v548 = vadd.f32 %v547, %v486
        %v549 = vadd.f32 %v548, %v491
        %v550 = vadd.f32 %v549, %v496
        %v551 = vadd.f32 %v550, %v501
        %v552 = vadd.f32 %v551, %v506
        %v553 = vadd.f32 %v552, %v511
        %v554 = vadd.f32 %v553, %v516
        %v555 = vrot.slane %v554, 4
        %v556 = vadd.f32 %v554, %v555
        %v557 = vrot.slane %v556, 2
        %v558 = vadd.f32 %v556, %v557
        %v559 = vrot.slane %v558, 1
        %v560 = vadd.f32 %v558, %v559
        %v561 = vmul.f32 %v361, %v361
        %v562 = vmul.f32 %v366, %v366
        %v563 = vmul.f32 %v371, %v371
        %v564 = vmul.f32 %v376, %v376
        %v565 = vmul.f32 %v381, %v381
        %v566 = vmul.f32 %v386, %v386
        %v567 = vmul.f32 %v391, %v391
        %v568 = vmul.f32 %v396, %v396
        %v569 = vmul.f32 %v401, %v401
        %v570 = vmul.f32 %v406, %v406
        %v571 = vmul.f32 %v411, %v411
        %v572 = vmul.f32 %v416, %v416
        %v573 = vmul.f32 %v421, %v421
        %v574 = vmul.f32 %v426, %v426
        %v575 = vmul.f32 %v431, %v431
        %v576 = vmul.f32 %v436, %v436
        %v577 = vmul.f32 %v441, %v441
        %v578 = vmul.f32 %v446, %v446
        %v579 = vmul.f32 %v451, %v451
        %v580 = vmul.f32 %v456, %v456
        %v581 = vmul.f32 %v461, %v461
        %v582 = vmul.f32 %v466, %v466
        %v583 = vmul.f32 %v471, %v471
        %v584 = vmul.f32 %v476, %v476
        %v585 = vmul.f32 %v481, %v481
        %v586 = vmul.f32 %v486, %v486
        %v587 = vmul.f32 %v491, %v491
        %v588 = vmul.f32 %v496, %v496
        %v589 = vmul.f32 %v501, %v501
        %v590 = vmul.f32 %v506, %v506
        %v591 = vmul.f32 %v511, %v511
        %v592 = vmul.f32 %v516, %v516
        %v593 = vadd.f32 %v561, %v562
        %v594 = vadd.f32 %v593, %v563
        %v595 = vadd.f32 %v594, %v564
        %v596 = vadd.f32 %v595, %v565
        %v597 = vadd.f32 %v596, %v566
        %v598 = vadd.f32 %v597, %v567
        %v599 = vadd.f32 %v598, %v568
        %v600 = vadd.f32 %v599, %v569
        %v601 = vadd.f32 %v600, %v570
        %v602 = vadd.f32 %v601, %v571
        %v603 = vadd.f32 %v602, %v572
        %v604 = vadd.f32 %v603, %v573
        %v605 = vadd.f32 %v604, %v574
        %v606 = vadd.f32 %v605, %v575
        %v607 = vadd.f32 %v606, %v576
        %v608 = vadd.f32 %v607, %v577
        %v609 = vadd.f32 %v608, %v578
        %v610 = vadd.f32 %v609, %v579
        %v611 = vadd.f32 %v610, %v580
        %v612 = vadd.f32 %v611, %v581
        %v613 = vadd.f32 %v612, %v582
        %v614 = vadd.f32 %v613, %v583
        %v615 = vadd.f32 %v614, %v584
        %v616 = vadd.f32 %v615, %v585
        %v617 = vadd.f32 %v616, %v586
        %v618 = vadd.f32 %v617, %v587
        %v619 = vadd.f32 %v618, %v588
        %v620 = vadd.f32 %v619, %v589
        %v621 = vadd.f32 %v620, %v590
        %v622 = vadd.f32 %v621, %v591
        %v623 = vadd.f32 %v622, %v592
        %v624 = vrot.slane %v623, 4
        %v625 = vadd.f32 %v623, %v624
        %v626 = vrot.slane %v625, 2
        %v627 = vadd.f32 %v625, %v626
        %v628 = vrot.slane %v627, 1
        %v629 = vadd.f32 %v627, %v628
        %v630 = vld [vmem:[%s154] sm:$0x3]
        %vm631 = vcmask 1040384
        %v632 = vsel %vm631, %v560, %v629
        %v633 = vadd.f32 %v630, %v632
        %634 = vst [vmem:[%s154] sm:$0x3] %v633
        %s635 = sand.u32 %s85, 1
        %s636 = scalar_lea.sflag [#allocation3], %s635
        %s637 = sand.u32 %s85, 1
        %s638 = smul.addr %s637, 8
        %s639 = scalar_lea.vmem [#allocation2], %s638
        // Predicated region
        $region33: #{tpu_custom_call.1} parent=27 // pred_check
          %p640 = pneg %p95
        $region34: #{tpu_custom_call.1} parent=27 // pred_check_branch
          %642 = sbr.rel (%p640) target = $region36
        $region35: #{tpu_custom_call.1} parent=27 // pred_region
          %s644 = ssub.s32 128, 128
          %645 = vsyncadd %s636, %s644
          %s646 = smul.addr %s20, 128
          %s647 = scalar_lea.hbm %s2, %s646
          %s649 = sshll.u32 %s639, 4
          %s650 = int_to_ptr.vmem [resolvable:$true] %s649
          %652 = dma.vmem_to_hbm [thread:$0]  %s650, 128, %s647, %s636
        $region36: #{tpu_custom_call.1} parent=27 // pred_fallthru
          _
      $region28: #{tpu_custom_call.1} parent=5 // pred_fallthru
        _
      %p653 = scmp.le.s32.totalorder 2, %s11
      // Predicated region
      $region37: #{tpu_custom_call.1} parent=5 // pred_check
        %p654 = pneg %p653
      $region38: #{tpu_custom_call.1} parent=5 // pred_check_branch
        %656 = sbr.rel (%p654) target = $region40
      $region39: #{tpu_custom_call.1} parent=5 // pred_region
        %s657 = ssub.s32 %s11, 2
        // Predicated region
        $region41: #{tpu_custom_call.1} parent=39 // pred_check
          %p658 = pneg %p101
        $region42: #{tpu_custom_call.1} parent=39 // pred_check_branch
          %660 = sbr.rel (%p658) target = $region44
        $region43: #{tpu_custom_call.1} parent=39 // pred_region
          %s661 = sand.u32 %s86, 1
          %s662 = scalar_lea.sflag [#allocation3], %s661
          %s663 = sand.u32 %s86, 1
          %s664 = smul.addr %s663, 8
          %s665 = scalar_lea.vmem [#allocation2], %s664
          %666 = dma.done %s662, 128
        $region44: #{tpu_custom_call.1} parent=39 // pred_fallthru
          _
      $region40: #{tpu_custom_call.1} parent=5 // pred_fallthru
        _
    $region6: #{tpu_custom_call.1} parent=1 // loop_footer
      %s15 = sadd.s32 1, %s11
    $region7: #{tpu_custom_call.1} parent=1 // loop_footer_branch
      %10 = sbr.rel target = $region3
    $region8: #{tpu_custom_call.1} parent=1 // loop_exit
      _
    %667 = vsyncpa [#allocation3], 1
    %s668 = scalar_lea.sflag [#allocation3], 1
    %669 = vsyncpa %s668, 1

</llo_original>
